<compile_context>
chip_gen: v6e
topology: v6e:2x2x1
jax: 0.10.0
libtpu: 0.0.40
codegen_flags: <defaults>
</compile_context>

<pallas_src>
import functools

import jax
import jax.numpy as jnp
from jax.experimental import pallas as pl
from jax.experimental.pallas import tpu as pltpu

_C = 384  # lanes per row: lcm(128, 3) -> lane-dense rows starting on point boundaries


def _contraction_kernel(x_ref, o_ref, *, order):
    # x_ref: (tile_r, C) block of the flattened, interleaved [x0 y0 z0 x1 ...]
    # position stream (C % 3 == 0, so each row starts at a point boundary).
    x = x_ref[...].astype(jnp.float32)
    c = x.shape[-1]

    # Hoisted lane masks: built at (1, C) (~3 vregs) once per grid step instead
    # of iota + non-pow2 modulo + compares on every data vreg.  They broadcast
    # along sublanes inside the selects below.
    lane = jax.lax.broadcasted_iota(jnp.int32, (1, c), 1) % 3
    is0 = lane == 0
    is1 = lane == 1

    if order is None or order == 2:
        # Squared L2 norm of each point, valid at lanes j % 3 == 0:
        #   m[j] = sq[j] + sq[j+1] + sq[j+2]   (rolls by c-1/c-2 == -1/-2).
        # The circular wrap at the row edge only lands on lanes whose m is
        # discarded by the selects below.
        sq = x * x
        m = sq + pltpu.roll(sq, c - 1, axis=1) + pltpu.roll(sq, c - 2, axis=1)
    elif order == float("inf"):
        a = jnp.abs(x)
        mx = jnp.maximum(a, jnp.maximum(pltpu.roll(a, c - 1, axis=1),
                                        pltpu.roll(a, c - 2, axis=1)))
        m = mx * mx  # mag^2, so the no-divide rsqrt path below is shared
    else:
        raise NotImplementedError("SceneContraction kernel supports order=None/2 or inf")

    # mag < 1  <=>  m = mag^2 < 1.   (2 - 1/mag) * (1/mag) == inv * (2 - inv).
    # m == 0 gives inv = inf -> NaN in the far branch, but the select keeps 1
    # there; do not replace the where with arithmetic blending.
    inv = jax.lax.rsqrt(m)  # 1/mag on the EUP slot; no sqrt + divide
    scale = jnp.where(m < 1.0, 1.0, inv * (2.0 - inv))

    # Broadcast the per-point scale (valid at lanes 0 mod 3) to all 3 lanes of
    # its point via two XLU lane rolls + selects against the hoisted masks.
    s1 = pltpu.roll(scale, 1, axis=1)
    s2 = pltpu.roll(scale, 2, axis=1)
    scale_b = jnp.where(is0, scale, jnp.where(is1, s1, s2))

    o_ref[...] = (x * scale_b).astype(o_ref.dtype)
    # TODO(synk): if a bundle dump shows XLU/VALU saturating on v7x, replace
    # the 4 lane rolls with an MXU matmul against a constant block-diagonal
    # (384,384) ones matrix (precision=HIGHEST) to offload the 3-sum+broadcast.


def _pick_tiling(rows):
    """Per-generation row tile + VMEM limit (v5e/v6e: 128 MiB VMEM; v7x: 64 MiB/TC)."""
    try:
        vmem_bytes = pltpu.get_tpu_info().vmem_capacity_bytes
    except Exception:  # query unavailable -> assume the smallest (v7x) VMEM
        vmem_bytes = 64 * 1024 * 1024

    if vmem_bytes >= 100 * 1024 * 1024:
        # v5e / v6e: 12 MiB f32 blocks; ~48 MiB live when double-buffered.
        tile_r_max, vmem_limit = 8192, 96 * 1024 * 1024
    else:
        # v7x: 6 MiB f32 blocks; ~24 MiB live, well under 64 MiB.
        tile_r_max, vmem_limit = 4096, 48 * 1024 * 1024

    tile_r = min(tile_r_max, rows)
    # Keep the grid >= 2 steps so both v7x TensorCores get work (harmless on
    # single-core v5e/v6e).  Tile stays a multiple of 8 sublanes; tiny inputs
    # (rows <= 8) keep a single full-extent block.
    if tile_r == rows and rows > 8:
        tile_r = (-(-rows // 2) + 7) // 8 * 8
    return tile_r, vmem_limit


def scene_contraction(positions, order=None):
    """Pallas implementation of SceneContraction.forward for position tensors.

    positions: float array of shape (*bs, 3); returns same shape / dtype.
    """
    orig_shape = positions.shape
    if orig_shape[-1] != 3:
        raise ValueError("last dimension must be 3")
    if positions.size == 0:
        return positions
    dtype = positions.dtype

    flat = positions.reshape(-1)  # free (contiguous) reshape
    n_el = flat.shape[0]
    rows = pl.cdiv(n_el, _C)
    n_pad = rows * _C
    if n_pad != n_el:
        # Ragged point counts (n_points % 128 != 0) pay one pad copy here and
        # one slice copy below; multiple-of-128 point counts hit the
        # zero-copy path.  Padded zero points take the identity branch and
        # are dropped below.
        # TODO(synk): remove these two extra HBM passes by masking the
        # <=383-element tail in-kernel (scalar-prefetch element count +
        # manual tail DMA with the overlap trick).
        flat = jnp.pad(flat, (0, n_pad - n_el))
    x2d = flat.reshape(rows, _C)  # free (contiguous) reshape

    tile_r, vmem_limit = _pick_tiling(rows)
    grid = (pl.cdiv(rows, tile_r),)

    kernel = functools.partial(_contraction_kernel, order=order)
    out2d = pl.pallas_call(
        kernel,
        out_shape=jax.ShapeDtypeStruct((rows, _C), dtype),
        grid=grid,
        in_specs=[pl.BlockSpec((tile_r, _C), lambda i: (i, 0))],
        out_specs=pl.BlockSpec((tile_r, _C), lambda i: (i, 0)),
        compiler_params=pltpu.CompilerParams(
            dimension_semantics=("parallel",),
            vmem_limit_bytes=vmem_limit,
        ),
    )(x2d)

    out = out2d.reshape(-1)
    if n_pad != n_el:
        out = out[:n_el]
    return out.reshape(orig_shape)


def _reference(positions, order=None):
    x = positions.astype(jnp.float32)
    if order == float("inf"):
        mag = jnp.max(jnp.abs(x), axis=-1, keepdims=True)
    else:
        mag = jnp.linalg.norm(x, axis=-1, keepdims=True)
    out = jnp.where(mag < 1.0, x, (2.0 - 1.0 / mag) * (x / mag))
    return out.astype(positions.dtype)


if __name__ == "__main__":
    key = jax.random.PRNGKey(0)
    # Small (*bs, 3) positions, scaled so both branches (||x||<1, ||x||>1) fire.
    positions = jax.random.normal(key, (2, 128, 3), dtype=jnp.float32) * 2.0

    # L2 (default / Frobenius) path.
    out = jax.block_until_ready(scene_contraction(positions, order=None))
    ref = _reference(positions, order=None)
    assert out.shape == positions.shape and out.dtype == positions.dtype
    assert jnp.allclose(out, ref, atol=1e-5, rtol=1e-5), "L2 mismatch vs reference"

    # L_inf path (recommended for hash-grid encodings).
    out_inf = jax.block_until_ready(scene_contraction(positions, order=float("inf")))
    ref_inf = _reference(positions, order=float("inf"))
    assert jnp.allclose(out_inf, ref_inf, atol=1e-5, rtol=1e-5), "Linf mismatch vs reference"

    # Ragged point count (not a multiple of 128) to exercise the pad/tail path.
    pos_rag = jax.random.normal(jax.random.PRNGKey(1), (37, 3), dtype=jnp.float32) * 3.0
    out_rag = jax.block_until_ready(scene_contraction(pos_rag, order=None))
    assert jnp.allclose(out_rag, _reference(pos_rag, order=None), atol=1e-5, rtol=1e-5), \
        "ragged mismatch vs reference"

    # bf16 I/O path (halves HBM traffic; math stays f32) and the >=2-step grid.
    pos_bf = (jax.random.normal(jax.random.PRNGKey(2), (4, 512, 3)) * 2.0).astype(jnp.bfloat16)
    out_bf = jax.block_until_ready(scene_contraction(pos_bf, order=None))
    ref_bf = _reference(pos_bf, order=None)
    assert out_bf.dtype == jnp.bfloat16
    assert jnp.allclose(out_bf.astype(jnp.float32), ref_bf.astype(jnp.float32),
                        atol=2e-2, rtol=2e-2), "bf16 mismatch vs reference"

    # TODO(synk): Gaussians branch (Jacobian-based covariance contraction) and
    # undo_forward / undo_forward_1d inverse paths are not kernelized; only the
    # position-tensor forward path (order=None/2/inf) is implemented.
    print("KERNEL_OK")
</pallas_src>

<mosaic_0001>
module attributes {stable_mosaic.version = 11 : i64} {
  func.func @_contraction_kernel(%arg0: i32, %arg1: memref<2x384xf32, #tpu.memory_space<vmem>>, %arg2: memref<2x384xf32, #tpu.memory_space<vmem>>) attributes {dimension_semantics = [#tpu.dimension_semantics<parallel>], iteration_bounds = array<i64: 1>, scalar_prefetch = 0 : i64, scratch_operands = 0 : i64, tpu.core_type = #tpu.core_type<tc>, window_params = [{transform_indices = @transform_0, window_bounds = array<i64: 2, 384>}, {transform_indices = @transform_1, window_bounds = array<i64: 2, 384>}]} {
    %c0 = arith.constant 0 : index
    %c0_0 = arith.constant 0 : index
    %0 = vector.load %arg1[%c0, %c0_0] : memref<2x384xf32, #tpu.memory_space<vmem>>, vector<2x384xf32>
    %1 = tpu.iota {dimensions = array<i32: 1>} : vector<1x384xi32>
    %c3_i32 = arith.constant 3 : i32
    %c0_i32 = arith.constant 0 : i32
    %2 = arith.cmpi eq, %c3_i32, %c0_i32 : i32
    %c1_i32 = arith.constant 1 : i32
    %3 = arith.select %2, %c1_i32, %c3_i32 : i32
    %4 = vector.broadcast %3 : i32 to vector<1x384xi32>
    %5 = arith.remsi %1, %4 : vector<1x384xi32>
    %c0_i32_1 = arith.constant 0 : i32
    %6 = vector.broadcast %c0_i32_1 : i32 to vector<1x384xi32>
    %7 = arith.cmpi ne, %5, %6 : vector<1x384xi32>
    %c0_i32_2 = arith.constant 0 : i32
    %8 = vector.broadcast %c0_i32_2 : i32 to vector<1x384xi32>
    %9 = arith.cmpi slt, %5, %8 : vector<1x384xi32>
    %c0_i32_3 = arith.constant 0 : i32
    %10 = arith.cmpi slt, %3, %c0_i32_3 : i32
    %11 = vector.broadcast %10 : i1 to vector<1x384xi1>
    %12 = vector.broadcast %11 : vector<1x384xi1> to vector<1x384xi1>
    %13 = arith.xori %9, %12 : vector<1x384xi1>
    %14 = arith.andi %13, %7 : vector<1x384xi1>
    %15 = vector.broadcast %3 : i32 to vector<1x384xi32>
    %16 = arith.addi %5, %15 : vector<1x384xi32>
    %17 = arith.select %14, %16, %5 : vector<1x384xi1>, vector<1x384xi32>
    %c0_i32_4 = arith.constant 0 : i32
    %18 = vector.broadcast %c0_i32_4 : i32 to vector<1x384xi32>
    %19 = arith.cmpi eq, %17, %18 : vector<1x384xi32>
    %c1_i32_5 = arith.constant 1 : i32
    %20 = vector.broadcast %c1_i32_5 : i32 to vector<1x384xi32>
    %21 = arith.cmpi eq, %17, %20 : vector<1x384xi32>
    %22 = arith.mulf %0, %0 : vector<2x384xf32>
    %c383_i32 = arith.constant 383 : i32
    %23 = tpu.dynamic_rotate %22 by %c383_i32 dim 1 : vector<2x384xf32>, i32 -> vector<2x384xf32>
    %24 = arith.addf %22, %23 : vector<2x384xf32>
    %c382_i32 = arith.constant 382 : i32
    %25 = tpu.dynamic_rotate %22 by %c382_i32 dim 1 : vector<2x384xf32>, i32 -> vector<2x384xf32>
    %26 = arith.addf %24, %25 : vector<2x384xf32>
    %27 = math.rsqrt %26 : vector<2x384xf32>
    %cst = arith.constant 1.000000e+00 : f32
    %28 = vector.broadcast %cst : f32 to vector<2x384xf32>
    %29 = arith.cmpf olt, %26, %28 : vector<2x384xf32>
    %cst_6 = arith.constant 2.000000e+00 : f32
    %30 = vector.broadcast %cst_6 : f32 to vector<2x384xf32>
    %31 = arith.subf %30, %27 : vector<2x384xf32>
    %32 = arith.mulf %27, %31 : vector<2x384xf32>
    %cst_7 = arith.constant 1.000000e+00 : f32
    %33 = vector.broadcast %cst_7 : f32 to vector<2x384xf32>
    %34 = arith.select %29, %33, %32 : vector<2x384xi1>, vector<2x384xf32>
    %c1_i32_8 = arith.constant 1 : i32
    %35 = tpu.dynamic_rotate %34 by %c1_i32_8 dim 1 : vector<2x384xf32>, i32 -> vector<2x384xf32>
    %c2_i32 = arith.constant 2 : i32
    %36 = tpu.dynamic_rotate %34 by %c2_i32 dim 1 : vector<2x384xf32>, i32 -> vector<2x384xf32>
    %37 = vector.shape_cast %21 : vector<1x384xi1> to vector<1x384xi1>
    %38 = vector.broadcast %37 : vector<1x384xi1> to vector<2x384xi1>
    %39 = arith.select %38, %35, %36 : vector<2x384xi1>, vector<2x384xf32>
    %40 = vector.shape_cast %19 : vector<1x384xi1> to vector<1x384xi1>
    %41 = vector.broadcast %40 : vector<1x384xi1> to vector<2x384xi1>
    %42 = arith.select %41, %34, %39 : vector<2x384xi1>, vector<2x384xf32>
    %43 = arith.mulf %0, %42 : vector<2x384xf32>
    %c0_9 = arith.constant 0 : index
    %c0_10 = arith.constant 0 : index
    %44 = vector.load %arg2[%c0_9, %c0_10] : memref<2x384xf32, #tpu.memory_space<vmem>>, vector<2x384xf32>
    tpu.vector_store %arg2[%c0_9, %c0_10], %43 {strides = array<i32>} : memref<2x384xf32, #tpu.memory_space<vmem>>, vector<2x384xf32>,
    return
  }
  func.func @transform_0(%arg0: i32) -> (i32, i32) {
    %c0_i32 = arith.constant 0 : i32
    %c0_i32_0 = arith.constant 0 : i32
    return %arg0, %c0_i32 : i32, i32
  }
  func.func @transform_1(%arg0: i32) -> (i32, i32) {
    %c0_i32 = arith.constant 0 : i32
    %c0_i32_0 = arith.constant 0 : i32
    return %arg0, %c0_i32 : i32, i32
  }
}

</mosaic_0001>

<llo_original>
// kernel: tpu_custom_call.1
$region0: #{tpu_custom_call.1}
  #allocation0 [shape = 'u32[]', space=smem, size = 0x4, offset = 0x4, fixed_abs, tag = 'smem constant byte address 0x4 - core index']
  #allocation1 [shape = 'u32[144,128]{1,0:T(1,128)}', space=vmem, size = 0x12000, scoped, tag = 'internal scratch']
  %s0 = inlined_call_operand.hbm [shape: f32[2,384], index: 0, kind: input, shape index: {}]
  %s1 = inlined_call_operand.hbm [shape: f32[2,384], index: 1, kind: output, shape index: {}]
  %s2 = sld [smem:[#allocation0]]
  $region18: #{tpu_custom_call.1} parent=0
    _
  %s4 = ssub.s32 1, %s2
  %s5 = scalar_select 0, %s4, %s2
  $region1: #{tpu_custom_call.1} parent=0
    #allocation2 [shape = 'u8[3072]{0}', space=vmem, size = 0xc00, scoped, tag = 'input window, operand 0, single buffered']
    #allocation3 [shape = 's32[1]{0}', space=sflag, size = 0x4, scoped, tag = 'scoped memory for tpu_custom_call.1']
    #allocation4 [shape = 's32[1]{0}', space=sflag, size = 0x4, scoped, tag = 'scoped memory for tpu_custom_call.1']
    #allocation5 [shape = 'u8[3072]{0}', space=vmem, size = 0xc00, scoped, tag = 'output window, operand 0, single buffered']
    %6 = vsyncpa [#allocation3], 0
    %7 = vsyncpa [#allocation4], 0
    // Predicated region
    $region2: #{tpu_custom_call.1} parent=1 // pred_check
      _
    $region3: #{tpu_custom_call.1} parent=1 // pred_check_branch
      %9 = sbr.rel (0) target = $region5
    $region4: #{tpu_custom_call.1} parent=1 // pred_region
      %s11 = ssub.s32 96, 96
      %12 = vsyncadd [#allocation3], %s11
      %s14 = sshll.u32 [#allocation2], 4
      %s15 = int_to_ptr.vmem [resolvable:$true] %s14
      %17 = dma.hbm_to_vmem [thread:$0]  %s0, 96, %s15, [#allocation3]
    $region5: #{tpu_custom_call.1} parent=1 // pred_fallthru
      _
    // Predicated region
    $region6: #{tpu_custom_call.1} parent=1 // pred_check
      _
    $region7: #{tpu_custom_call.1} parent=1 // pred_check_branch
      %19 = sbr.rel (0) target = $region9
    $region8: #{tpu_custom_call.1} parent=1 // pred_region
      %20 = dma.done [#allocation3], 96
    $region9: #{tpu_custom_call.1} parent=1 // pred_fallthru
      _
    %v21 = vld [vmem:[#allocation2] sm:$0x3f]
    %v22 = vlaneseq
    %v23 = vand.u32 %v22, 127
    %v24 = vadd.s32 %v23, 128
    %v25 = vadd.s32 %v23, 256
    %vm26 = vcmp.lt.s32.totalorder %v23, 0
    %v27 = vsub.s32 0, %v23
    %v28 = vsel %vm26, %v27, %v23
    %v29 = vmul.u32.u64.compose %v28, 2863311531
    %v30 = vextract.low.u32 %v29
    %v31 = vextract.high.u32 %v29
    %v32 = vshrl.u32 %v31, 1
    %v33 = vmul.u32 %v32, 3
    %v34 = vsub.s32 %v28, %v33
    %v35 = vsub.s32 0, %v34
    %v36 = vsel %vm26, %v35, %v34
    %vm37 = vcmp.lt.s32.totalorder %v24, 0
    %v38 = vsub.s32 0, %v24
    %v39 = vsel %vm37, %v38, %v24
    %v40 = vmul.u32.u64.compose %v39, 2863311531
    %v41 = vextract.low.u32 %v40
    %v42 = vextract.high.u32 %v40
    %v43 = vshrl.u32 %v42, 1
    %v44 = vmul.u32 %v43, 3
    %v45 = vsub.s32 %v39, %v44
    %v46 = vsub.s32 0, %v45
    %v47 = vsel %vm37, %v46, %v45
    %vm48 = vcmp.lt.s32.totalorder %v25, 0
    %v49 = vsub.s32 0, %v25
    %v50 = vsel %vm48, %v49, %v25
    %v51 = vmul.u32.u64.compose %v50, 2863311531
    %v52 = vextract.low.u32 %v51
    %v53 = vextract.high.u32 %v51
    %v54 = vshrl.u32 %v53, 1
    %v55 = vmul.u32 %v54, 3
    %v56 = vsub.s32 %v50, %v55
    %v57 = vsub.s32 0, %v56
    %v58 = vsel %vm48, %v57, %v56
    %vm59 = vcmp.ne.s32.totalorder %v36, 0
    %vm60 = vcmp.ne.s32.totalorder %v47, 0
    %vm61 = vcmp.ne.s32.totalorder %v58, 0
    %vm62 = vcmp.lt.s32.totalorder %v36, 0
    %vm63 = vcmp.lt.s32.totalorder %v47, 0
    %vm64 = vcmp.lt.s32.totalorder %v58, 0
    %vm65 = vmand %vm62, %vm59
    %vm66 = vmand %vm63, %vm60
    %vm67 = vmand %vm64, %vm61
    %v68 = vadd.s32 %v36, 3
    %v69 = vadd.s32 %v47, 3
    %v70 = vadd.s32 %v58, 3
    %v71 = vsel %vm65, %v68, %v36
    %v72 = vsel %vm66, %v69, %v47
    %v73 = vsel %vm67, %v70, %v58
    %vm74 = vcmp.eq.s32.totalorder %v71, 0
    %vm75 = vcmp.eq.s32.totalorder %v72, 0
    %vm76 = vcmp.eq.s32.totalorder %v73, 0
    %vm77 = vcmp.eq.s32.totalorder %v71, 1
    %vm78 = vcmp.eq.s32.totalorder %v72, 1
    %vm79 = vcmp.eq.s32.totalorder %v73, 1
    %v80 = vmul.f32 %v21, %v21
    %v82 = vcombine.high %v80, %v80
    %v84 = vunpack.c.l.s4 1983009808
    %v85 = vunpack.c.0.s8 %v84
    %v86 = vlaneseq
    %v87 = vshrl.u32 %v86, 7
    %v88 = vsub.s32 %v85, %v87
    %v89 = vrot.slane %v80, %v88
    %v91 = vunpack.c.l.s4 1983009808
    %v92 = vunpack.c.0.s8 %v91
    %v93 = vlaneseq
    %v94 = vshrl.u32 %v93, 7
    %v95 = vsub.s32 %v92, %v94
    %v96 = vrot.slane %v82, %v95
    %v97 = vcombine.high %v89, %v89
    %101 = vrot.lane.b32.xlu0 %v89, 127
    %v102 = vpop.permute.xlu0 %101
    %103 = vrot.lane.b32.xlu0 %v97, 127
    %v104 = vpop.permute.xlu0 %103
    %105 = vrot.lane.b32.xlu0 %v96, 127
    %v106 = vpop.permute.xlu0 %105
    %vm107 = vcmp.lt.s32.totalorder %v23, 127
    %v108 = vsel %vm107, %v104, %v106
    %v109 = vsel %vm107, %v102, %v104
    %v110 = vsel %vm107, %v106, %v102
    %v114 = vcombine.low %v109, %v108
    %v116 = vunpack.c.l.s4 1983009808
    %v117 = vunpack.c.0.s8 %v116
    %v118 = vlaneseq
    %v119 = vshrl.u32 %v118, 7
    %v120 = vsub.s32 %v117, %v119
    %v121 = vrot.slane %v114, %v120
    %v123 = vunpack.c.l.s4 1983009808
    %v124 = vunpack.c.0.s8 %v123
    %v125 = vlaneseq
    %v126 = vshrl.u32 %v125, 7
    %v127 = vsub.s32 %v124, %v126
    %v128 = vrot.slane %v110, %v127
    %v129 = vcombine.low %v121, %v128
    %v131 = vadd.f32 %v80, %v129
    %132 = vrot.lane.b32.xlu0 %v89, 126
    %v133 = vpop.permute.xlu0 %132
    %134 = vrot.lane.b32.xlu0 %v97, 126
    %v135 = vpop.permute.xlu0 %134
    %136 = vrot.lane.b32.xlu0 %v96, 126
    %v137 = vpop.permute.xlu0 %136
    %vm138 = vcmp.lt.s32.totalorder %v23, 126
    %v139 = vsel %vm138, %v135, %v137
    %v140 = vsel %vm138, %v133, %v135
    %v141 = vsel %vm138, %v137, %v133
    %v145 = vcombine.low %v140, %v139
    %v147 = vunpack.c.l.s4 1983009808
    %v148 = vunpack.c.0.s8 %v147
    %v149 = vlaneseq
    %v150 = vshrl.u32 %v149, 7
    %v151 = vsub.s32 %v148, %v150
    %v152 = vrot.slane %v145, %v151
    %v154 = vunpack.c.l.s4 1983009808
    %v155 = vunpack.c.0.s8 %v154
    %v156 = vlaneseq
    %v157 = vshrl.u32 %v156, 7
    %v158 = vsub.s32 %v155, %v157
    %v159 = vrot.slane %v141, %v158
    %v160 = vcombine.low %v152, %v159
    %v162 = vadd.f32 %v131, %v160
    %v163 = vrsqrt.pop %v162
    %vm164 = vcmp.lt.f32.partialorder %v162, 1.0
    %v165 = vsub.f32 2.0, %v163
    %v166 = vmul.f32 %v163, %v165
    %v167 = vsel %vm164, 1.0, %v166
    %v169 = vcombine.high %v167, %v167
    %v171 = vunpack.c.l.s4 1983009808
    %v172 = vunpack.c.0.s8 %v171
    %v173 = vlaneseq
    %v174 = vshrl.u32 %v173, 7
    %v175 = vsub.s32 %v172, %v174
    %v176 = vrot.slane %v167, %v175
    %v178 = vunpack.c.l.s4 1983009808
    %v179 = vunpack.c.0.s8 %v178
    %v180 = vlaneseq
    %v181 = vshrl.u32 %v180, 7
    %v182 = vsub.s32 %v179, %v181
    %v183 = vrot.slane %v169, %v182
    %v184 = vcombine.high %v176, %v176
    %188 = vrot.lane.b32.xlu0 %v176, 1
    %v189 = vpop.permute.xlu0 %188
    %190 = vrot.lane.b32.xlu0 %v184, 1
    %v191 = vpop.permute.xlu0 %190
    %192 = vrot.lane.b32.xlu0 %v183, 1
    %v193 = vpop.permute.xlu0 %192
    %vm194 = vcmp.lt.s32.totalorder %v23, 1
    %v195 = vsel %vm194, %v191, %v193
    %v196 = vsel %vm194, %v189, %v191
    %v197 = vsel %vm194, %v193, %v189
    %198 = vrot.lane.b32.xlu0 %v176, 2
    %v199 = vpop.permute.xlu0 %198
    %200 = vrot.lane.b32.xlu0 %v184, 2
    %v201 = vpop.permute.xlu0 %200
    %202 = vrot.lane.b32.xlu0 %v183, 2
    %v203 = vpop.permute.xlu0 %202
    %vm204 = vcmp.lt.s32.totalorder %v23, 2
    %v205 = vsel %vm204, %v201, %v203
    %v206 = vsel %vm204, %v199, %v201
    %v207 = vsel %vm204, %v203, %v199
    %v208 = vsel %vm77, 1, 0
    %v209 = vsel %vm78, 1, 0
    %v210 = vsel %vm79, 1, 0
    %vm211 = vcmp.eq.s32.totalorder %v208, 1
    %vm212 = vcmp.eq.s32.totalorder %v209, 1
    %vm213 = vcmp.eq.s32.totalorder %v210, 1
    %v214 = vsel %vm211, %v197, %v207
    %v215 = vsel %vm212, %v196, %v206
    %v216 = vsel %vm213, %v195, %v205
    %v217 = vsel %vm74, 1, 0
    %v218 = vsel %vm75, 1, 0
    %v219 = vsel %vm76, 1, 0
    %vm220 = vcmp.eq.s32.totalorder %v217, 1
    %vm221 = vcmp.eq.s32.totalorder %v218, 1
    %vm222 = vcmp.eq.s32.totalorder %v219, 1
    %v223 = vsel %vm220, %v176, %v214
    %v224 = vsel %vm221, %v184, %v215
    %v225 = vsel %vm222, %v183, %v216
    %v229 = vcombine.low %v223, %v224
    %v231 = vunpack.c.l.s4 1983009808
    %v232 = vunpack.c.0.s8 %v231
    %v233 = vlaneseq
    %v234 = vshrl.u32 %v233, 7
    %v235 = vsub.s32 %v232, %v234
    %v236 = vrot.slane %v229, %v235
    %v238 = vunpack.c.l.s4 1983009808
    %v239 = vunpack.c.0.s8 %v238
    %v240 = vlaneseq
    %v241 = vshrl.u32 %v240, 7
    %v242 = vsub.s32 %v239, %v241
    %v243 = vrot.slane %v225, %v242
    %v244 = vcombine.low %v236, %v243
    %v246 = vmul.f32 %v21, %v244
    %247 = vst [vmem:[#allocation5] sm:$0x3f] %v246
    // Predicated region
    $region10: #{tpu_custom_call.1} parent=1 // pred_check
      _
    $region11: #{tpu_custom_call.1} parent=1 // pred_check_branch
      %249 = sbr.rel (0) target = $region13
    $region12: #{tpu_custom_call.1} parent=1 // pred_region
      %s251 = ssub.s32 96, 96
      %252 = vsyncadd [#allocation4], %s251
      %s254 = sshll.u32 [#allocation5], 4
      %s255 = int_to_ptr.vmem [resolvable:$true] %s254
      %257 = dma.vmem_to_hbm [thread:$0]  %s255, 96, %s1, [#allocation4]
    $region13: #{tpu_custom_call.1} parent=1 // pred_fallthru
      _
    // Predicated region
    $region14: #{tpu_custom_call.1} parent=1 // pred_check
      _
    $region15: #{tpu_custom_call.1} parent=1 // pred_check_branch
      %259 = sbr.rel (0) target = $region17
    $region16: #{tpu_custom_call.1} parent=1 // pred_region
      %260 = dma.done [#allocation4], 96
    $region17: #{tpu_custom_call.1} parent=1 // pred_fallthru
      _
    %261 = vsyncpa [#allocation3], 1
    %262 = vsyncpa [#allocation4], 1

</llo_original>
